<compile_context>
chip_gen: v6e
topology: v6e:2x2x1
jax: 0.10.0
libtpu: 0.0.40
codegen_flags: <defaults>
</compile_context>

<pallas_src>
import functools
import math

import jax
import jax.numpy as jnp
from jax.experimental import pallas as pl
from jax.experimental.pallas import tpu as pltpu

HIDDEN1_UNITS = 400
HIDDEN2_UNITS = 300

_LANE = 128
_SUBLANE = 8


def _round_up(n, m):
    return ((n + m - 1) // m) * m


def _cdiv(a, b):
    return (a + b - 1) // b


H1_PAD = _round_up(HIDDEN1_UNITS, _LANE)   # 512
H2_PAD = _round_up(HIDDEN2_UNITS, _LANE)   # 384


def actor_kernel(x_ref, w1_ref, b1_ref, w2_ref, b2_ref, w3_ref, b3_ref, o_ref):
    # Only the MXU inputs are cast to bf16; accumulation and all elementwise
    # math (bias add, ReLU, tanh) stay f32.
    x = x_ref[...]
    h1 = jnp.dot(x.astype(jnp.bfloat16), w1_ref[...],
                 preferred_element_type=jnp.float32)
    h1 = jnp.maximum(h1 + b1_ref[...], 0.0)

    h2 = jnp.dot(h1.astype(jnp.bfloat16), w2_ref[...],
                 preferred_element_type=jnp.float32)
    h2 = jnp.maximum(h2 + b2_ref[...], 0.0)

    out = jnp.dot(h2.astype(jnp.bfloat16), w3_ref[...],
                  preferred_element_type=jnp.float32)
    o_ref[...] = jnp.tanh(out + b3_ref[...]).astype(o_ref.dtype)


@functools.partial(jax.jit, static_argnames=("action_size", "batch_tile"))
def actor_forward(x, params, *, action_size, batch_tile=512):
    """x: [B, state_size] f32. params: dict of padded, pre-transposed weights."""
    w1, b1 = params["w1"], params["b1"]
    w2, b2 = params["w2"], params["b2"]
    w3, b3 = params["w3"], params["b3"]

    B, S = x.shape
    H1 = w1.shape[1]      # 512
    H2 = w2.shape[1]      # 384
    A_PAD = w3.shape[1]   # round_up(action_size, 128)

    # Batch tile: multiple of 8 sublanes, capped at batch_tile, chosen so the
    # padded batch is minimal (at most 7 extra rows per tile).
    b8 = _round_up(B, _SUBLANE)
    n_tiles = _cdiv(b8, batch_tile)
    tb = _round_up(_cdiv(b8, n_tiles), _SUBLANE)
    b_pad = n_tiles * tb
    if b_pad != B:
        x = jnp.pad(x, ((0, b_pad - B), (0, 0)))

    def resident(shape):
        # Constant index_map -> block loaded to VMEM once and reused across
        # all grid steps; Buffered(1) drops the useless second pipeline buffer.
        return pl.BlockSpec(shape, lambda i: (0, 0), pipeline_mode=pl.Buffered(1))

    out = pl.pallas_call(
        actor_kernel,
        out_shape=jax.ShapeDtypeStruct((b_pad, A_PAD), jnp.float32),
        grid_spec=pltpu.PrefetchScalarGridSpec(
            num_scalar_prefetch=0,
            grid=(b_pad // tb,),
            in_specs=[
                pl.BlockSpec((tb, S), lambda i: (i, 0)),   # x: batch-tiled
                resident((S, H1)),                          # w1
                resident((1, H1)),                          # b1
                resident((H1, H2)),                         # w2
                resident((1, H2)),                          # b2
                resident((H2, A_PAD)),                      # w3
                resident((1, A_PAD)),                       # b3
            ],
            out_specs=pl.BlockSpec((tb, A_PAD), lambda i: (i, 0)),
        ),
        compiler_params=pltpu.CompilerParams(
            dimension_semantics=("parallel",),   # shard batch tiles on v7x's 2 TCs
        ),
    )(x, w1, b1, w2, b2, w3, b3)
    # Drop batch padding rows and the zero-padded action lanes.
    return out[:B, :action_size]


def init_actor_params(key, state_size, action_size, custom_init=True,
                      weight_dtype=jnp.bfloat16):
    """Mirror the PyTorch Actor init; weights transposed to [in, out] and
    zero-padded so hidden dims AND the action dim are 128-lane multiples."""
    k1, k2, k3, k4, k5, k6 = jax.random.split(key, 6)
    lim1 = 1.0 / math.sqrt(state_size)
    lim2 = 1.0 / math.sqrt(HIDDEN1_UNITS)
    if custom_init:
        lim3 = 3.0 * 0.01
    else:
        # PyTorch default nn.Linear init (kaiming_uniform(a=sqrt(5)) + bias
        # bound) reduces to U(-1/sqrt(fan_in), 1/sqrt(fan_in)) for both.
        lim3 = 1.0 / math.sqrt(HIDDEN2_UNITS)

    def u(k, shape, lim):
        return jax.random.uniform(k, shape, dtype=jnp.float32,
                                  minval=-lim, maxval=lim)

    w1 = u(k1, (state_size, HIDDEN1_UNITS), lim1)
    b1 = u(k2, (1, HIDDEN1_UNITS), lim1)
    w2 = u(k3, (HIDDEN1_UNITS, HIDDEN2_UNITS), lim2)
    b2 = u(k4, (1, HIDDEN2_UNITS), lim2)
    w3 = u(k5, (HIDDEN2_UNITS, action_size), lim3)
    b3 = u(k6, (1, action_size), lim3)

    a_pad = _round_up(action_size, _LANE)

    # Zero-pad: padded h1/h2 lanes are exactly zero after ReLU(0 + 0), zero
    # weight rows contribute nothing, and padded b3 lanes are exactly zero so
    # padded output columns are tanh(0)=0 — the forward pass on the kept
    # columns is numerically identical to the unpadded network.
    w1p = jnp.zeros((state_size, H1_PAD), jnp.float32).at[:, :HIDDEN1_UNITS].set(w1)
    b1p = jnp.zeros((1, H1_PAD), jnp.float32).at[:, :HIDDEN1_UNITS].set(b1)
    w2p = jnp.zeros((H1_PAD, H2_PAD), jnp.float32).at[:HIDDEN1_UNITS,
                                                      :HIDDEN2_UNITS].set(w2)
    b2p = jnp.zeros((1, H2_PAD), jnp.float32).at[:, :HIDDEN2_UNITS].set(b2)
    w3p = jnp.zeros((H2_PAD, a_pad), jnp.float32).at[:HIDDEN2_UNITS,
                                                     :action_size].set(w3)
    b3p = jnp.zeros((1, a_pad), jnp.float32).at[:, :action_size].set(b3)

    return {
        "w1": w1p.astype(weight_dtype), "b1": b1p,
        "w2": w2p.astype(weight_dtype), "b2": b2p,
        "w3": w3p.astype(weight_dtype), "b3": b3p,
    }


def actor_reference(x, params, action_size):
    """Pure-JAX reference using the exact same padded/bf16-cast math."""
    wdt = params["w1"].dtype
    h1 = jnp.maximum(
        jnp.dot(x.astype(wdt), params["w1"], preferred_element_type=jnp.float32)
        + params["b1"], 0.0)
    h2 = jnp.maximum(
        jnp.dot(h1.astype(wdt), params["w2"], preferred_element_type=jnp.float32)
        + params["b2"], 0.0)
    out = jnp.dot(h2.astype(wdt), params["w3"], preferred_element_type=jnp.float32)
    return jnp.tanh(out + params["b3"])[:, :action_size]


if __name__ == "__main__":
    key = jax.random.PRNGKey(0)
    k_params, k_x = jax.random.split(key)

    batch = 8
    state_size = 32
    action_size = 8

    params = init_actor_params(k_params, state_size, action_size, custom_init=True)
    x = jax.random.normal(k_x, (batch, state_size), dtype=jnp.float32)

    out = actor_forward(x, params, action_size=action_size)
    out = jax.block_until_ready(out)

    ref = jax.block_until_ready(actor_reference(x, params, action_size))
    assert out.shape == (batch, action_size)
    assert jnp.allclose(out, ref, atol=5e-3, rtol=5e-3), "mismatch vs reference"

    print("KERNEL_OK")
</pallas_src>

<mosaic_0001>
module attributes {stable_mosaic.version = 11 : i64} {
  func.func @actor_kernel(%arg0: i32, %arg1: memref<8x32xf32, #tpu.memory_space<vmem>>, %arg2: memref<32x512xbf16, #tpu.memory_space<vmem>>, %arg3: memref<1x512xf32, #tpu.memory_space<vmem>>, %arg4: memref<512x384xbf16, #tpu.memory_space<vmem>>, %arg5: memref<1x384xf32, #tpu.memory_space<vmem>>, %arg6: memref<384x128xbf16, #tpu.memory_space<vmem>>, %arg7: memref<1x128xf32, #tpu.memory_space<vmem>>, %arg8: memref<8x128xf32, #tpu.memory_space<vmem>>) attributes {dimension_semantics = [#tpu.dimension_semantics<parallel>], iteration_bounds = array<i64: 1>, scalar_prefetch = 0 : i64, scratch_operands = 0 : i64, tpu.core_type = #tpu.core_type<tc>, window_params = [{transform_indices = @transform_0, window_bounds = array<i64: 8, 32>}, {pipeline_mode = #tpu.pipeline_mode<synchronous>, transform_indices = @transform_1, window_bounds = array<i64: 32, 512>}, {pipeline_mode = #tpu.pipeline_mode<synchronous>, transform_indices = @transform_2, window_bounds = array<i64: 1, 512>}, {pipeline_mode = #tpu.pipeline_mode<synchronous>, transform_indices = @transform_3, window_bounds = array<i64: 512, 384>}, {pipeline_mode = #tpu.pipeline_mode<synchronous>, transform_indices = @transform_4, window_bounds = array<i64: 1, 384>}, {pipeline_mode = #tpu.pipeline_mode<synchronous>, transform_indices = @transform_5, window_bounds = array<i64: 384, 128>}, {pipeline_mode = #tpu.pipeline_mode<synchronous>, transform_indices = @transform_6, window_bounds = array<i64: 1, 128>}, {transform_indices = @transform_7, window_bounds = array<i64: 8, 128>}]} {
    %c0 = arith.constant 0 : index
    %c0_0 = arith.constant 0 : index
    %0 = vector.load %arg1[%c0, %c0_0] : memref<8x32xf32, #tpu.memory_space<vmem>>, vector<8x32xf32>
    %1 = arith.truncf %0 : vector<8x32xf32> to vector<8x32xbf16>
    %c0_1 = arith.constant 0 : index
    %c0_2 = arith.constant 0 : index
    %2 = vector.load %arg2[%c0_1, %c0_2] : memref<32x512xbf16, #tpu.memory_space<vmem>>, vector<32x512xbf16>
    %cst = arith.constant dense<0.000000e+00> : vector<8x512xf32>
    %3 = tpu.matmul %1, %2, %cst {dimension_numbers = #tpu.dot_dimension_numbers<[1], [0], [0], [1], [0, 0, 1, 1], [], []>} : vector<8x32xbf16>, vector<32x512xbf16>, vector<8x512xf32> -> vector<8x512xf32>
    %c0_3 = arith.constant 0 : index
    %c0_4 = arith.constant 0 : index
    %4 = vector.load %arg3[%c0_3, %c0_4] : memref<1x512xf32, #tpu.memory_space<vmem>>, vector<1x512xf32>
    %5 = vector.broadcast %4 : vector<1x512xf32> to vector<8x512xf32>
    %6 = arith.addf %3, %5 : vector<8x512xf32>
    %cst_5 = arith.constant 0.000000e+00 : f32
    %7 = vector.broadcast %cst_5 : f32 to vector<8x512xf32>
    %8 = arith.maximumf %6, %7 : vector<8x512xf32>
    %9 = arith.truncf %8 : vector<8x512xf32> to vector<8x512xbf16>
    %c0_6 = arith.constant 0 : index
    %c0_7 = arith.constant 0 : index
    %10 = vector.load %arg4[%c0_6, %c0_7] : memref<512x384xbf16, #tpu.memory_space<vmem>>, vector<512x384xbf16>
    %cst_8 = arith.constant dense<0.000000e+00> : vector<8x384xf32>
    %11 = tpu.matmul %9, %10, %cst_8 {dimension_numbers = #tpu.dot_dimension_numbers<[1], [0], [0], [1], [0, 0, 1, 1], [], []>} : vector<8x512xbf16>, vector<512x384xbf16>, vector<8x384xf32> -> vector<8x384xf32>
    %c0_9 = arith.constant 0 : index
    %c0_10 = arith.constant 0 : index
    %12 = vector.load %arg5[%c0_9, %c0_10] : memref<1x384xf32, #tpu.memory_space<vmem>>, vector<1x384xf32>
    %13 = vector.broadcast %12 : vector<1x384xf32> to vector<8x384xf32>
    %14 = arith.addf %11, %13 : vector<8x384xf32>
    %cst_11 = arith.constant 0.000000e+00 : f32
    %15 = vector.broadcast %cst_11 : f32 to vector<8x384xf32>
    %16 = arith.maximumf %14, %15 : vector<8x384xf32>
    %17 = arith.truncf %16 : vector<8x384xf32> to vector<8x384xbf16>
    %c0_12 = arith.constant 0 : index
    %c0_13 = arith.constant 0 : index
    %18 = vector.load %arg6[%c0_12, %c0_13] : memref<384x128xbf16, #tpu.memory_space<vmem>>, vector<384x128xbf16>
    %cst_14 = arith.constant dense<0.000000e+00> : vector<8x128xf32>
    %19 = tpu.matmul %17, %18, %cst_14 {dimension_numbers = #tpu.dot_dimension_numbers<[1], [0], [0], [1], [0, 0, 1, 1], [], []>} : vector<8x384xbf16>, vector<384x128xbf16>, vector<8x128xf32> -> vector<8x128xf32>
    %c0_15 = arith.constant 0 : index
    %c0_16 = arith.constant 0 : index
    %20 = vector.load %arg7[%c0_15, %c0_16] : memref<1x128xf32, #tpu.memory_space<vmem>>, vector<1x128xf32>
    %21 = vector.broadcast %20 : vector<1x128xf32> to vector<8x128xf32>
    %22 = arith.addf %19, %21 : vector<8x128xf32>
    %23 = math.tanh %22 : vector<8x128xf32>
    %c0_17 = arith.constant 0 : index
    %c0_18 = arith.constant 0 : index
    %24 = vector.load %arg8[%c0_17, %c0_18] : memref<8x128xf32, #tpu.memory_space<vmem>>, vector<8x128xf32>
    tpu.vector_store %arg8[%c0_17, %c0_18], %23 {strides = array<i32>} : memref<8x128xf32, #tpu.memory_space<vmem>>, vector<8x128xf32>,
    return
  }
  func.func @transform_0(%arg0: i32) -> (i32, i32) {
    %c0_i32 = arith.constant 0 : i32
    %c0_i32_0 = arith.constant 0 : i32
    return %arg0, %c0_i32 : i32, i32
  }
  func.func @transform_1(%arg0: i32) -> (i32, i32) {
    %c0_i32 = arith.constant 0 : i32
    %c0_i32_0 = arith.constant 0 : i32
    %c0_i32_1 = arith.constant 0 : i32
    return %c0_i32, %c0_i32_0 : i32, i32
  }
  func.func @transform_2(%arg0: i32) -> (i32, i32) {
    %c0_i32 = arith.constant 0 : i32
    %c0_i32_0 = arith.constant 0 : i32
    %c0_i32_1 = arith.constant 0 : i32
    return %c0_i32, %c0_i32_0 : i32, i32
  }
  func.func @transform_3(%arg0: i32) -> (i32, i32) {
    %c0_i32 = arith.constant 0 : i32
    %c0_i32_0 = arith.constant 0 : i32
    %c0_i32_1 = arith.constant 0 : i32
    return %c0_i32, %c0_i32_0 : i32, i32
  }
  func.func @transform_4(%arg0: i32) -> (i32, i32) {
    %c0_i32 = arith.constant 0 : i32
    %c0_i32_0 = arith.constant 0 : i32
    %c0_i32_1 = arith.constant 0 : i32
    return %c0_i32, %c0_i32_0 : i32, i32
  }
  func.func @transform_5(%arg0: i32) -> (i32, i32) {
    %c0_i32 = arith.constant 0 : i32
    %c0_i32_0 = arith.constant 0 : i32
    %c0_i32_1 = arith.constant 0 : i32
    return %c0_i32, %c0_i32_0 : i32, i32
  }
  func.func @transform_6(%arg0: i32) -> (i32, i32) {
    %c0_i32 = arith.constant 0 : i32
    %c0_i32_0 = arith.constant 0 : i32
    %c0_i32_1 = arith.constant 0 : i32
    return %c0_i32, %c0_i32_0 : i32, i32
  }
  func.func @transform_7(%arg0: i32) -> (i32, i32) {
    %c0_i32 = arith.constant 0 : i32
    %c0_i32_0 = arith.constant 0 : i32
    return %arg0, %c0_i32 : i32, i32
  }
}

</mosaic_0001>

<llo_original>
// kernel: actor_forward.1
$region0: #{actor_forward.1}
  #allocation0 [shape = 'u32[]', space=smem, size = 0x4, offset = 0x4, fixed_abs, tag = 'smem constant byte address 0x4 - core index']
  #allocation1 [shape = 'u32[144,128]{1,0:T(1,128)}', space=vmem, size = 0x12000, scoped, tag = 'internal scratch']
  %s0 = inlined_call_operand.hbm [shape: f32[8,32], index: 0, kind: input, shape index: {}]
  %s1 = inlined_call_operand.hbm [shape: bf16[32,512], index: 1, kind: input, shape index: {}]
  %s2 = inlined_call_operand.hbm [shape: f32[1,512], index: 2, kind: input, shape index: {}]
  %s3 = inlined_call_operand.hbm [shape: bf16[512,384], index: 3, kind: input, shape index: {}]
  %s4 = inlined_call_operand.vmem [shape: f32[1,384], index: 4, kind: input, shape index: {}]
  %s5 = inlined_call_operand.hbm [shape: bf16[384,128], index: 5, kind: input, shape index: {}]
  %s6 = inlined_call_operand.vmem [shape: f32[1,128], index: 6, kind: input, shape index: {}]
  %s7 = inlined_call_operand.hbm [shape: f32[8,128], index: 7, kind: output, shape index: {}]
  %s8 = sld [smem:[#allocation0]]
  $region58: #{actor_forward.1} parent=0
    _
  %s10 = ssub.s32 1, %s8
  %s11 = scalar_select 0, %s10, %s8
  $region1: #{actor_forward.1} parent=0
    #allocation2 [shape = 'u8[4096]{0}', space=vmem, size = 0x1000, scoped, tag = 'input window, operand 0, single buffered']
    #allocation3 [shape = 's32[1]{0}', space=sflag, size = 0x4, scoped, tag = 'scoped memory for actor_forward.1']
    #allocation4 [shape = 's32[1]{0}', space=sflag, size = 0x4, scoped, tag = 'scoped memory for actor_forward.1']
    #allocation5 [shape = 'u8[32768]{0}', space=vmem, size = 0x8000, scoped, tag = 'input window, operand 1, single buffered']
    #allocation6 [shape = 's32[1]{0}', space=sflag, size = 0x4, scoped, tag = 'scoped memory for actor_forward.1']
    #allocation7 [shape = 'u8[2048]{0}', space=vmem, size = 0x800, scoped, tag = 'input window, operand 2, single buffered']
    #allocation8 [shape = 'u8[393216]{0}', space=vmem, size = 0x60000, scoped, tag = 'input window, operand 3, single buffered']
    #allocation9 [shape = 's32[1]{0}', space=sflag, size = 0x4, scoped, tag = 'scoped memory for actor_forward.1']
    #allocation10 [shape = 'u8[98304]{0}', space=vmem, size = 0x18000, scoped, tag = 'input window, operand 5, single buffered']
    #allocation11 [shape = 'u8[4096]{0}', space=vmem, size = 0x1000, scoped, tag = 'output window, operand 0, single buffered']
    %12 = vsyncpa [#allocation3], 0
    %13 = vsyncpa [#allocation6], 0
    %14 = vsyncpa [#allocation9], 0
    %15 = vsyncpa [#allocation4], 0
    // Predicated region
    $region2: #{actor_forward.1} parent=1 // pred_check
      _
    $region3: #{actor_forward.1} parent=1 // pred_check_branch
      %17 = sbr.rel (0) target = $region5
    $region4: #{actor_forward.1} parent=1 // pred_region
      %s19 = ssub.s32 128, 128
      %20 = vsyncadd [#allocation3], %s19
      %s22 = sshll.u32 [#allocation2], 4
      %s23 = int_to_ptr.vmem [resolvable:$true] %s22
      %25 = dma.hbm_to_vmem [thread:$0]  %s0, 128, %s23, [#allocation3]
    $region5: #{actor_forward.1} parent=1 // pred_fallthru
      _
    // Predicated region
    $region6: #{actor_forward.1} parent=1 // pred_check
      _
    $region7: #{actor_forward.1} parent=1 // pred_check_branch
      %27 = sbr.rel (0) target = $region9
    $region8: #{actor_forward.1} parent=1 // pred_region
      %s29 = ssub.s32 1024, 1024
      %30 = vsyncadd [#allocation6], %s29
      %s31 = sshll.u32 [#allocation5], 4
      %s32 = int_to_ptr.vmem [resolvable:$true] %s31
      %37 = dma.hbm_to_vmem [thread:$0]  %s1, 1024, %s32, [#allocation6], 256, 256, 16
    $region9: #{actor_forward.1} parent=1 // pred_fallthru
      _
    // Predicated region
    $region10: #{actor_forward.1} parent=1 // pred_check
      _
    $region11: #{actor_forward.1} parent=1 // pred_check_branch
      %39 = sbr.rel (0) target = $region13
    $region12: #{actor_forward.1} parent=1 // pred_region
      %s41 = ssub.s32 64, 64
      %42 = vsyncadd [#allocation6], %s41
      %s44 = sshll.u32 [#allocation7], 4
      %s45 = int_to_ptr.vmem [resolvable:$true] %s44
      %47 = dma.hbm_to_vmem [thread:$0]  %s2, 64, %s45, [#allocation6]
    $region13: #{actor_forward.1} parent=1 // pred_fallthru
      _
    // Predicated region
    $region14: #{actor_forward.1} parent=1 // pred_check
      _
    $region15: #{actor_forward.1} parent=1 // pred_check_branch
      %49 = sbr.rel (0) target = $region17
    $region16: #{actor_forward.1} parent=1 // pred_region
      %s51 = ssub.s32 12288, 12288
      %52 = vsyncadd [#allocation9], %s51
      %s53 = sshll.u32 [#allocation8], 4
      %s54 = int_to_ptr.vmem [resolvable:$true] %s53
      %59 = dma.hbm_to_vmem [thread:$0]  %s3, 12288, %s54, [#allocation9], 192, 192, 12
    $region17: #{actor_forward.1} parent=1 // pred_fallthru
      _
    // Predicated region
    $region18: #{actor_forward.1} parent=1 // pred_check
      _
    $region19: #{actor_forward.1} parent=1 // pred_check_branch
      %61 = sbr.rel (0) target = $region21
    $region20: #{actor_forward.1} parent=1 // pred_region
      _
    $region21: #{actor_forward.1} parent=1 // pred_fallthru
      _
    // Predicated region
    $region22: #{actor_forward.1} parent=1 // pred_check
      _
    $region23: #{actor_forward.1} parent=1 // pred_check_branch
      %63 = sbr.rel (0) target = $region25
    $region24: #{actor_forward.1} parent=1 // pred_region
      %s65 = ssub.s32 3072, 3072
      %66 = vsyncadd [#allocation9], %s65
      %s67 = sshll.u32 [#allocation10], 4
      %s68 = int_to_ptr.vmem [resolvable:$true] %s67
      %73 = dma.hbm_to_vmem [thread:$0]  %s5, 3072, %s68, [#allocation9], 64, 64, 4
    $region25: #{actor_forward.1} parent=1 // pred_fallthru
      _
    // Predicated region
    $region26: #{actor_forward.1} parent=1 // pred_check
      _
    $region27: #{actor_forward.1} parent=1 // pred_check_branch
      %75 = sbr.rel (0) target = $region29
    $region28: #{actor_forward.1} parent=1 // pred_region
      _
    $region29: #{actor_forward.1} parent=1 // pred_fallthru
      _
    // Predicated region
    $region30: #{actor_forward.1} parent=1 // pred_check
      _
    $region31: #{actor_forward.1} parent=1 // pred_check_branch
      %77 = sbr.rel (0) target = $region33
    $region32: #{actor_forward.1} parent=1 // pred_region
      %78 = dma.done [#allocation3], 128
    $region33: #{actor_forward.1} parent=1 // pred_fallthru
      _
    // Predicated region
    $region34: #{actor_forward.1} parent=1 // pred_check
      _
    $region35: #{actor_forward.1} parent=1 // pred_check_branch
      %80 = sbr.rel (0) target = $region37
    $region36: #{actor_forward.1} parent=1 // pred_region
      %81 = dma.done [#allocation6], 1024
    $region37: #{actor_forward.1} parent=1 // pred_fallthru
      _
    // Predicated region
    $region38: #{actor_forward.1} parent=1 // pred_check
      _
    $region39: #{actor_forward.1} parent=1 // pred_check_branch
      %83 = sbr.rel (0) target = $region41
    $region40: #{actor_forward.1} parent=1 // pred_region
      %84 = dma.done [#allocation6], 64
    $region41: #{actor_forward.1} parent=1 // pred_fallthru
      _
    // Predicated region
    $region42: #{actor_forward.1} parent=1 // pred_check
      _
    $region43: #{actor_forward.1} parent=1 // pred_check_branch
      %86 = sbr.rel (0) target = $region45
    $region44: #{actor_forward.1} parent=1 // pred_region
      %87 = dma.done [#allocation9], 12288
    $region45: #{actor_forward.1} parent=1 // pred_fallthru
      _
    // Predicated region
    $region46: #{actor_forward.1} parent=1 // pred_check
      _
    $region47: #{actor_forward.1} parent=1 // pred_check_branch
      %89 = sbr.rel (0) target = $region49
    $region48: #{actor_forward.1} parent=1 // pred_region
      %90 = dma.done [#allocation9], 3072
    $region49: #{actor_forward.1} parent=1 // pred_fallthru
      _
    %v92 = vld [vmem:[#allocation2] sm:$0xff]
    %v93 = vpack.c.bf16 %v92, %v92
    %v94 = vld [vmem:[#allocation5] sm:$0xff]
    %v95 = vld [vmem:[#allocation5 + $0x8] sm:$0xff]
    %v96 = vld [vmem:[#allocation5 + $0x10] sm:$0xff]
    %v97 = vld [vmem:[#allocation5 + $0x18] sm:$0xff]
    %v98 = vld [vmem:[#allocation5 + $0x20] sm:$0xff]
    %v99 = vld [vmem:[#allocation5 + $0x28] sm:$0xff]
    %v100 = vld [vmem:[#allocation5 + $0x30] sm:$0xff]
    %v101 = vld [vmem:[#allocation5 + $0x38] sm:$0xff]
    %v102 = vld [vmem:[#allocation7] sm:$0xf]
    %v104 = vlaneseq
    %v105 = vshrl.u32 %v104, 7
    %v106 = vsub.s32 0, %v105
    %v107 = vrot.slane %v102, %v106
    %v108 = vlaneseq
    %v109 = vshrl.u32 %v108, 7
    %v110 = vsub.s32 1, %v109
    %v111 = vrot.slane %v102, %v110
    %v112 = vlaneseq
    %v113 = vshrl.u32 %v112, 7
    %v114 = vsub.s32 2, %v113
    %v115 = vrot.slane %v102, %v114
    %v116 = vlaneseq
    %v117 = vshrl.u32 %v116, 7
    %v118 = vsub.s32 3, %v117
    %v119 = vrot.slane %v102, %v118
    %v132 = vunpack.c.l.b16 %v94
    %v133 = vunpack.c.h.b16 %v94
    %v134 = vunpack.c.l.b16 %v95
    %v135 = vunpack.c.h.b16 %v95
    %v136 = vunpack.c.l.b16 %v96
    %v137 = vunpack.c.h.b16 %v96
    %v138 = vunpack.c.l.b16 %v97
    %v139 = vunpack.c.h.b16 %v97
    %v140 = vunpack.c.l.b16 %v98
    %v141 = vunpack.c.h.b16 %v98
    %v142 = vunpack.c.l.b16 %v99
    %v143 = vunpack.c.h.b16 %v99
    %v144 = vunpack.c.l.b16 %v100
    %v145 = vunpack.c.h.b16 %v100
    %v146 = vunpack.c.l.b16 %v101
    %v147 = vunpack.c.h.b16 %v101
    %v148 = vpack.c.b16 %v136, %v132
    %v149 = vpack.c.b16 %v137, %v133
    %v150 = vpack.c.b16 %v138, %v134
    %v151 = vpack.c.b16 %v139, %v135
    %v152 = vpack.c.b16 %v144, %v140
    %v153 = vpack.c.b16 %v145, %v141
    %v154 = vpack.c.b16 %v146, %v142
    %v155 = vpack.c.b16 %v147, %v143
    %vm164 = vcmask 261120
    %v166 = vsel %vm164, %v93, 0
    %168 = vmatprep.subr.bf16.mxu0 0
    %169 = vmatpush1.bf16.msra.mxu0 0
    %170 = vmatprep.subr.bf16.mxu0 0
    %171 = vmatpush1.bf16.msra.mxu0 0
    %172 = vmatprep.subr.bf16.mxu0 0
    %173 = vmatpush1.bf16.msra.mxu0 0
    %174 = vmatprep.subr.bf16.mxu0 0
    %175 = vmatpush1.bf16.msra.mxu0 0
    %176 = vmatprep.subr.bf16.mxu0 0
    %177 = vmatpush1.bf16.msra.mxu0 0
    %178 = vmatprep.subr.bf16.mxu0 0
    %179 = vmatpush1.bf16.msra.mxu0 0
    %180 = vmatprep.subr.bf16.mxu0 %v153
    %181 = vmatpush1.bf16.msra.mxu0 %v152
    %182 = vmatprep.subr.bf16.mxu0 %v149
    %183 = vmatpush1.bf16.msra.mxu0 %v148
    %184 = vmatprep.subr.bf16.mxu0 0
    %185 = vmatpush2.bf16.msra.mxu0 0
    %186 = vmatprep.subr.bf16.mxu0 0
    %187 = vmatpush2.bf16.msra.mxu0 0
    %188 = vmatprep.subr.bf16.mxu0 0
    %189 = vmatpush2.bf16.msra.mxu0 0
    %190 = vmatprep.subr.bf16.mxu0 0
    %191 = vmatpush2.bf16.msra.mxu0 0
    %192 = vmatprep.subr.bf16.mxu0 0
    %193 = vmatpush2.bf16.msra.mxu0 0
    %194 = vmatprep.subr.bf16.mxu0 0
    %195 = vmatpush2.bf16.msra.mxu0 0
    %196 = vmatprep.subr.bf16.mxu0 0
    %197 = vmatpush2.bf16.msra.mxu0 0
    %198 = vmatprep.subr.bf16.mxu0 0
    %199 = vmatpush2.bf16.msra.mxu0 0
    %200 = vmatprep.mubr.bf16.mxu0 0
    %201 = vmatmul.mubr.bf16.gmra.mxu0 %v166
    %v202 = vpop.f32.mrf.mxu0
    %v203 = vadd.f32 %v107, %v202
    %v204 = vpop.f32.mrf.mxu0
    %v205 = vadd.f32 %v111, %v204
    %v206 = vpop.f32.mrf.mxu0
    %v207 = vpop.f32.mrf.mxu0
    %208 = vdwg.mxu0
    %209 = vmatprep.subr.bf16.mxu0 0
    %210 = vmatpush1.bf16.msra.mxu0 0
    %211 = vmatprep.subr.bf16.mxu0 0
    %212 = vmatpush1.bf16.msra.mxu0 0
    %213 = vmatprep.subr.bf16.mxu0 0
    %214 = vmatpush1.bf16.msra.mxu0 0
    %215 = vmatprep.subr.bf16.mxu0 0
    %216 = vmatpush1.bf16.msra.mxu0 0
    %217 = vmatprep.subr.bf16.mxu0 0
    %218 = vmatpush1.bf16.msra.mxu0 0
    %219 = vmatprep.subr.bf16.mxu0 0
    %220 = vmatpush1.bf16.msra.mxu0 0
    %221 = vmatprep.subr.bf16.mxu0 %v155
    %222 = vmatpush1.bf16.msra.mxu0 %v154
    %223 = vmatprep.subr.bf16.mxu0 %v151
    %224 = vmatpush1.bf16.msra.mxu0 %v150
    %225 = vmatprep.subr.bf16.mxu0 0
    %226 = vmatpush2.bf16.msra.mxu0 0
    %227 = vmatprep.subr.bf16.mxu0 0
    %228 = vmatpush2.bf16.msra.mxu0 0
    %229 = vmatprep.subr.bf16.mxu0 0
    %230 = vmatpush2.bf16.msra.mxu0 0
    %231 = vmatprep.subr.bf16.mxu0 0
    %232 = vmatpush2.bf16.msra.mxu0 0
    %233 = vmatprep.subr.bf16.mxu0 0
    %234 = vmatpush2.bf16.msra.mxu0 0
    %235 = vmatprep.subr.bf16.mxu0 0
    %236 = vmatpush2.bf16.msra.mxu0 0
    %237 = vmatprep.subr.bf16.mxu0 0
    %238 = vmatpush2.bf16.msra.mxu0 0
    %239 = vmatprep.subr.bf16.mxu0 0
    %240 = vmatpush2.bf16.msra.mxu0 0
    %241 = vmatprep.mubr.bf16.mxu0 0
    %242 = vmatmul.mubr.bf16.gmra.mxu0 %v166
    %v243 = vpop.f32.mrf.mxu0
    %v244 = vadd.f32 %v115, %v243
    %v245 = vpop.f32.mrf.mxu0
    %v246 = vadd.f32 %v119, %v245
    %v247 = vpop.f32.mrf.mxu0
    %v248 = vpop.f32.mrf.mxu0
    %249 = vdwg.mxu0
    %v250 = vmax.f32 %v203, 0.0
    %v251 = vmax.f32 %v205, 0.0
    %v252 = vmax.f32 %v244, 0.0
    %v253 = vmax.f32 %v246, 0.0
    %v254 = vpack.c.bf16 %v250, %v250
    %v255 = vpack.c.bf16 %v251, %v251
    %v256 = vpack.c.bf16 %v252, %v252
    %v257 = vpack.c.bf16 %v253, %v253
    %v258 = vld [vmem:[#allocation8] sm:$0xff]
    %v259 = vld [vmem:[#allocation8 + $0x8] sm:$0xf]
    %v260 = vld [vmem:[#allocation8 + $0xc] sm:$0xff]
    %v261 = vld [vmem:[#allocation8 + $0x14] sm:$0xf]
    %v262 = vld [vmem:[#allocation8 + $0x18] sm:$0xff]
    %v263 = vld [vmem:[#allocation8 + $0x20] sm:$0xf]
    %v264 = vld [vmem:[#allocation8 + $0x24] sm:$0xff]
    %v265 = vld [vmem:[#allocation8 + $0x2c] sm:$0xf]
    %v266 = vld [vmem:[#allocation8 + $0x30] sm:$0xff]
    %v267 = vld [vmem:[#allocation8 + $0x38] sm:$0xf]
    %v268 = vld [vmem:[#allocation8 + $0x3c] sm:$0xff]
    %v269 = vld [vmem:[#allocation8 + $0x44] sm:$0xf]
    %v270 = vld [vmem:[#allocation8 + $0x48] sm:$0xff]
    %v271 = vld [vmem:[#allocation8 + $0x50] sm:$0xf]
    %v272 = vld [vmem:[#allocation8 + $0x54] sm:$0xff]
    %v273 = vld [vmem:[#allocation8 + $0x5c] sm:$0xf]
    %v274 = vld [vmem:[#allocation8 + $0x60] sm:$0xff]
    %v275 = vld [vmem:[#allocation8 + $0x68] sm:$0xf]
    %v276 = vld [vmem:[#allocation8 + $0x6c] sm:$0xff]
    %v277 = vld [vmem:[#allocation8 + $0x74] sm:$0xf]
    %v278 = vld [vmem:[#allocation8 + $0x78] sm:$0xff]
    %v279 = vld [vmem:[#allocation8 + $0x80] sm:$0xf]
    %v280 = vld [vmem:[#allocation8 + $0x84] sm:$0xff]
    %v281 = vld [vmem:[#allocation8 + $0x8c] sm:$0xf]
    %v282 = vld [vmem:[#allocation8 + $0x90] sm:$0xff]
    %v283 = vld [vmem:[#allocation8 + $0x98] sm:$0xf]
    %v284 = vld [vmem:[#allocation8 + $0x9c] sm:$0xff]
    %v285 = vld [vmem:[#allocation8 + $0xa4] sm:$0xf]
    %v286 = vld [vmem:[#allocation8 + $0xa8] sm:$0xff]
    %v287 = vld [vmem:[#allocation8 + $0xb0] sm:$0xf]
    %v288 = vld [vmem:[#allocation8 + $0xb4] sm:$0xff]
    %v289 = vld [vmem:[#allocation8 + $0xbc] sm:$0xf]
    %v290 = vld [vmem:[#allocation8 + $0xc0] sm:$0xff]
    %v291 = vld [vmem:[#allocation8 + $0xc8] sm:$0xf]
    %v292 = vld [vmem:[#allocation8 + $0xcc] sm:$0xff]
    %v293 = vld [vmem:[#allocation8 + $0xd4] sm:$0xf]
    %v294 = vld [vmem:[#allocation8 + $0xd8] sm:$0xff]
    %v295 = vld [vmem:[#allocation8 + $0xe0] sm:$0xf]
    %v296 = vld [vmem:[#allocation8 + $0xe4] sm:$0xff]
    %v297 = vld [vmem:[#allocation8 + $0xec] sm:$0xf]
    %v298 = vld [vmem:[#allocation8 + $0xf0] sm:$0xff]
    %v299 = vld [vmem:[#allocation8 + $0xf8] sm:$0xf]
    %v300 = vld [vmem:[#allocation8 + $0xfc] sm:$0xff]
    %v301 = vld [vmem:[#allocation8 + $0x104] sm:$0xf]
    %v302 = vld [vmem:[#allocation8 + $0x108] sm:$0xff]
    %v303 = vld [vmem:[#allocation8 + $0x110] sm:$0xf]
    %v304 = vld [vmem:[#allocation8 + $0x114] sm:$0xff]
    %v305 = vld [vmem:[#allocation8 + $0x11c] sm:$0xf]
    %v306 = vld [vmem:[#allocation8 + $0x120] sm:$0xff]
    %v307 = vld [vmem:[#allocation8 + $0x128] sm:$0xf]
    %v308 = vld [vmem:[#allocation8 + $0x12c] sm:$0xff]
    %v309 = vld [vmem:[#allocation8 + $0x134] sm:$0xf]
    %v310 = vld [vmem:[#allocation8 + $0x138] sm:$0xff]
    %v311 = vld [vmem:[#allocation8 + $0x140] sm:$0xf]
    %v312 = vld [vmem:[#allocation8 + $0x144] sm:$0xff]
    %v313 = vld [vmem:[#allocation8 + $0x14c] sm:$0xf]
    %v314 = vld [vmem:[#allocation8 + $0x150] sm:$0xff]
    %v315 = vld [vmem:[#allocation8 + $0x158] sm:$0xf]
    %v316 = vld [vmem:[#allocation8 + $0x15c] sm:$0xff]
    %v317 = vld [vmem:[#allocation8 + $0x164] sm:$0xf]
    %v318 = vld [vmem:[#allocation8 + $0x168] sm:$0xff]
    %v319 = vld [vmem:[#allocation8 + $0x170] sm:$0xf]
    %v320 = vld [vmem:[#allocation8 + $0x174] sm:$0xff]
    %v321 = vld [vmem:[#allocation8 + $0x17c] sm:$0xf]
    %v322 = vld [vmem:[#allocation8 + $0x180] sm:$0xff]
    %v323 = vld [vmem:[#allocation8 + $0x188] sm:$0xf]
    %v324 = vld [vmem:[#allocation8 + $0x18c] sm:$0xff]
    %v325 = vld [vmem:[#allocation8 + $0x194] sm:$0xf]
    %v326 = vld [vmem:[#allocation8 + $0x198] sm:$0xff]
    %v327 = vld [vmem:[#allocation8 + $0x1a0] sm:$0xf]
    %v328 = vld [vmem:[#allocation8 + $0x1a4] sm:$0xff]
    %v329 = vld [vmem:[#allocation8 + $0x1ac] sm:$0xf]
    %v330 = vld [vmem:[#allocation8 + $0x1b0] sm:$0xff]
    %v331 = vld [vmem:[#allocation8 + $0x1b8] sm:$0xf]
    %v332 = vld [vmem:[#allocation8 + $0x1bc] sm:$0xff]
    %v333 = vld [vmem:[#allocation8 + $0x1c4] sm:$0xf]
    %v334 = vld [vmem:[#allocation8 + $0x1c8] sm:$0xff]
    %v335 = vld [vmem:[#allocation8 + $0x1d0] sm:$0xf]
    %v336 = vld [vmem:[#allocation8 + $0x1d4] sm:$0xff]
    %v337 = vld [vmem:[#allocation8 + $0x1dc] sm:$0xf]
    %v338 = vld [vmem:[#allocation8 + $0x1e0] sm:$0xff]
    %v339 = vld [vmem:[#allocation8 + $0x1e8] sm:$0xf]
    %v340 = vld [vmem:[#allocation8 + $0x1ec] sm:$0xff]
    %v341 = vld [vmem:[#allocation8 + $0x1f4] sm:$0xf]
    %v342 = vld [vmem:[#allocation8 + $0x1f8] sm:$0xff]
    %v343 = vld [vmem:[#allocation8 + $0x200] sm:$0xf]
    %v344 = vld [vmem:[#allocation8 + $0x204] sm:$0xff]
    %v345 = vld [vmem:[#allocation8 + $0x20c] sm:$0xf]
    %v346 = vld [vmem:[#allocation8 + $0x210] sm:$0xff]
    %v347 = vld [vmem:[#allocation8 + $0x218] sm:$0xf]
    %v348 = vld [vmem:[#allocation8 + $0x21c] sm:$0xff]
    %v349 = vld [vmem:[#allocation8 + $0x224] sm:$0xf]
    %v350 = vld [vmem:[#allocation8 + $0x228] sm:$0xff]
    %v351 = vld [vmem:[#allocation8 + $0x230] sm:$0xf]
    %v352 = vld [vmem:[#allocation8 + $0x234] sm:$0xff]
    %v353 = vld [vmem:[#allocation8 + $0x23c] sm:$0xf]
    %v354 = vld [vmem:[#allocation8 + $0x240] sm:$0xff]
    %v355 = vld [vmem:[#allocation8 + $0x248] sm:$0xf]
    %v356 = vld [vmem:[#allocation8 + $0x24c] sm:$0xff]
    %v357 = vld [vmem:[#allocation8 + $0x254] sm:$0xf]
    %v358 = vld [vmem:[#allocation8 + $0x258] sm:$0xff]
    %v359 = vld [vmem:[#allocation8 + $0x260] sm:$0xf]
    %v360 = vld [vmem:[#allocation8 + $0x264] sm:$0xff]
    %v361 = vld [vmem:[#allocation8 + $0x26c] sm:$0xf]
    %v362 = vld [vmem:[#allocation8 + $0x270] sm:$0xff]
    %v363 = vld [vmem:[#allocation8 + $0x278] sm:$0xf]
    %v364 = vld [vmem:[#allocation8 + $0x27c] sm:$0xff]
    %v365 = vld [vmem:[#allocation8 + $0x284] sm:$0xf]
    %v366 = vld [vmem:[#allocation8 + $0x288] sm:$0xff]
    %v367 = vld [vmem:[#allocation8 + $0x290] sm:$0xf]
    %v368 = vld [vmem:[#allocation8 + $0x294] sm:$0xff]
    %v369 = vld [vmem:[#allocation8 + $0x29c] sm:$0xf]
    %v370 = vld [vmem:[#allocation8 + $0x2a0] sm:$0xff]
    %v371 = vld [vmem:[#allocation8 + $0x2a8] sm:$0xf]
    %v372 = vld [vmem:[#allocation8 + $0x2ac] sm:$0xff]
    %v373 = vld [vmem:[#allocation8 + $0x2b4] sm:$0xf]
    %v374 = vld [vmem:[#allocation8 + $0x2b8] sm:$0xff]
    %v375 = vld [vmem:[#allocation8 + $0x2c0] sm:$0xf]
    %v376 = vld [vmem:[#allocation8 + $0x2c4] sm:$0xff]
    %v377 = vld [vmem:[#allocation8 + $0x2cc] sm:$0xf]
    %v378 = vld [vmem:[#allocation8 + $0x2d0] sm:$0xff]
    %v379 = vld [vmem:[#allocation8 + $0x2d8] sm:$0xf]
    %v380 = vld [vmem:[#allocation8 + $0x2dc] sm:$0xff]
    %v381 = vld [vmem:[#allocation8 + $0x2e4] sm:$0xf]
    %v382 = vld [vmem:[#allocation8 + $0x2e8] sm:$0xff]
    %v383 = vld [vmem:[#allocation8 + $0x2f0] sm:$0xf]
    %v384 = vld [vmem:[#allocation8 + $0x2f4] sm:$0xff]
    %v385 = vld [vmem:[#allocation8 + $0x2fc] sm:$0xf]
    %v386 = vld [vmem:[%s4] sm:$0x7]
    %v388 = vlaneseq
    %v389 = vshrl.u32 %v388, 7
    %v390 = vsub.s32 0, %v389
    %v391 = vrot.slane %v386, %v390
    %v392 = vlaneseq
    %v393 = vshrl.u32 %v392, 7
    %v394 = vsub.s32 1, %v393
    %v395 = vrot.slane %v386, %v394
    %v396 = vlaneseq
    %v397 = vshrl.u32 %v396, 7
    %v398 = vsub.s32 2, %v397
    %v399 = vrot.slane %v386, %v398
    %v531 = vunpack.c.l.b16 %v258
    %v532 = vunpack.c.h.b16 %v258
    %v533 = vunpack.c.l.b16 %v259
    %v534 = vunpack.c.l.b16 %v260
    %v535 = vunpack.c.h.b16 %v260
    %v536 = vunpack.c.l.b16 %v261
    %v537 = vunpack.c.l.b16 %v262
    %v538 = vunpack.c.h.b16 %v262
    %v539 = vunpack.c.l.b16 %v263
    %v540 = vunpack.c.l.b16 %v264
    %v541 = vunpack.c.h.b16 %v264
    %v542 = vunpack.c.l.b16 %v265
    %v543 = vunpack.c.l.b16 %v266
    %v544 = vunpack.c.h.b16 %v266
    %v545 = vunpack.c.l.b16 %v267
    %v546 = vunpack.c.l.b16 %v268
    %v547 = vunpack.c.h.b16 %v268
    %v548 = vunpack.c.l.b16 %v269
    %v549 = vunpack.c.l.b16 %v270
    %v550 = vunpack.c.h.b16 %v270
    %v551 = vunpack.c.l.b16 %v271
    %v552 = vunpack.c.l.b16 %v272
    %v553 = vunpack.c.h.b16 %v272
    %v554 = vunpack.c.l.b16 %v273
    %v555 = vunpack.c.l.b16 %v274
    %v556 = vunpack.c.h.b16 %v274
    %v557 = vunpack.c.l.b16 %v275
    %v558 = vunpack.c.l.b16 %v276
    %v559 = vunpack.c.h.b16 %v276
    %v560 = vunpack.c.l.b16 %v277
    %v561 = vunpack.c.l.b16 %v278
    %v562 = vunpack.c.h.b16 %v278
    %v563 = vunpack.c.l.b16 %v279
    %v564 = vunpack.c.l.b16 %v280
    %v565 = vunpack.c.h.b16 %v280
    %v566 = vunpack.c.l.b16 %v281
    %v567 = vunpack.c.l.b16 %v282
    %v568 = vunpack.c.h.b16 %v282
    %v569 = vunpack.c.l.b16 %v283
    %v570 = vunpack.c.l.b16 %v284
    %v571 = vunpack.c.h.b16 %v284
    %v572 = vunpack.c.l.b16 %v285
    %v573 = vunpack.c.l.b16 %v286
    %v574 = vunpack.c.h.b16 %v286
    %v575 = vunpack.c.l.b16 %v287
    %v576 = vunpack.c.l.b16 %v288
    %v577 = vunpack.c.h.b16 %v288
    %v578 = vunpack.c.l.b16 %v289
    %v579 = vunpack.c.l.b16 %v290
    %v580 = vunpack.c.h.b16 %v290
    %v581 = vunpack.c.l.b16 %v291
    %v582 = vunpack.c.l.b16 %v292
    %v583 = vunpack.c.h.b16 %v292
    %v584 = vunpack.c.l.b16 %v293
    %v585 = vunpack.c.l.b16 %v294
    %v586 = vunpack.c.h.b16 %v294
    %v587 = vunpack.c.l.b16 %v295
    %v588 = vunpack.c.l.b16 %v296
    %v589 = vunpack.c.h.b16 %v296
    %v590 = vunpack.c.l.b16 %v297
    %v591 = vunpack.c.l.b16 %v298
    %v592 = vunpack.c.h.b16 %v298
    %v593 = vunpack.c.l.b16 %v299
    %v594 = vunpack.c.l.b16 %v300
    %v595 = vunpack.c.h.b16 %v300
    %v596 = vunpack.c.l.b16 %v301
    %v597 = vunpack.c.l.b16 %v302
    %v598 = vunpack.c.h.b16 %v302
    %v599 = vunpack.c.l.b16 %v303
    %v600 = vunpack.c.l.b16 %v304
    %v601 = vunpack.c.h.b16 %v304
    %v602 = vunpack.c.l.b16 %v305
    %v603 = vunpack.c.l.b16 %v306
    %v604 = vunpack.c.h.b16 %v306
    %v605 = vunpack.c.l.b16 %v307
    %v606 = vunpack.c.l.b16 %v308
    %v607 = vunpack.c.h.b16 %v308
    %v608 = vunpack.c.l.b16 %v309
    %v609 = vunpack.c.l.b16 %v310
    %v610 = vunpack.c.h.b16 %v310
    %v611 = vunpack.c.l.b16 %v311
    %v612 = vunpack.c.l.b16 %v312
    %v613 = vunpack.c.h.b16 %v312
    %v614 = vunpack.c.l.b16 %v313
    %v615 = vunpack.c.l.b16 %v314
    %v616 = vunpack.c.h.b16 %v314
    %v617 = vunpack.c.l.b16 %v315
    %v618 = vunpack.c.l.b16 %v316
    %v619 = vunpack.c.h.b16 %v316
    %v620 = vunpack.c.l.b16 %v317
    %v621 = vunpack.c.l.b16 %v318
    %v622 = vunpack.c.h.b16 %v318
    %v623 = vunpack.c.l.b16 %v319
    %v624 = vunpack.c.l.b16 %v320
    %v625 = vunpack.c.h.b16 %v320
    %v626 = vunpack.c.l.b16 %v321
    %v627 = vunpack.c.l.b16 %v322
    %v628 = vunpack.c.h.b16 %v322
    %v629 = vunpack.c.l.b16 %v323
    %v630 = vunpack.c.l.b16 %v324
    %v631 = vunpack.c.h.b16 %v324
    %v632 = vunpack.c.l.b16 %v325
    %v633 = vunpack.c.l.b16 %v326
    %v634 = vunpack.c.h.b16 %v326
    %v635 = vunpack.c.l.b16 %v327
    %v636 = vunpack.c.l.b16 %v328
    %v637 = vunpack.c.h.b16 %v328
    %v638 = vunpack.c.l.b16 %v329
    %v639 = vunpack.c.l.b16 %v330
    %v640 = vunpack.c.h.b16 %v330
    %v641 = vunpack.c.l.b16 %v331
    %v642 = vunpack.c.l.b16 %v332
    %v643 = vunpack.c.h.b16 %v332
    %v644 = vunpack.c.l.b16 %v333
    %v645 = vunpack.c.l.b16 %v334
    %v646 = vunpack.c.h.b16 %v334
    %v647 = vunpack.c.l.b16 %v335
    %v648 = vunpack.c.l.b16 %v336
    %v649 = vunpack.c.h.b16 %v336
    %v650 = vunpack.c.l.b16 %v337
    %v651 = vunpack.c.l.b16 %v338
    %v652 = vunpack.c.h.b16 %v338
    %v653 = vunpack.c.l.b16 %v339
    %v654 = vunpack.c.l.b16 %v340
    %v655 = vunpack.c.h.b16 %v340
    %v656 = vunpack.c.l.b16 %v341
    %v657 = vunpack.c.l.b16 %v342
    %v658 = vunpack.c.h.b16 %v342
    %v659 = vunpack.c.l.b16 %v343
    %v660 = vunpack.c.l.b16 %v344
    %v661 = vunpack.c.h.b16 %v344
    %v662 = vunpack.c.l.b16 %v345
    %v663 = vunpack.c.l.b16 %v346
    %v664 = vunpack.c.h.b16 %v346
    %v665 = vunpack.c.l.b16 %v347
    %v666 = vunpack.c.l.b16 %v348
    %v667 = vunpack.c.h.b16 %v348
    %v668 = vunpack.c.l.b16 %v349
    %v669 = vunpack.c.l.b16 %v350
    %v670 = vunpack.c.h.b16 %v350
    %v671 = vunpack.c.l.b16 %v351
    %v672 = vunpack.c.l.b16 %v352
    %v673 = vunpack.c.h.b16 %v352
    %v674 = vunpack.c.l.b16 %v353
    %v675 = vunpack.c.l.b16 %v354
    %v676 = vunpack.c.h.b16 %v354
    %v677 = vunpack.c.l.b16 %v355
    %v678 = vunpack.c.l.b16 %v356
    %v679 = vunpack.c.h.b16 %v356
    %v680 = vunpack.c.l.b16 %v357
    %v681 = vunpack.c.l.b16 %v358
    %v682 = vunpack.c.h.b16 %v358
    %v683 = vunpack.c.l.b16 %v359
    %v684 = vunpack.c.l.b16 %v360
    %v685 = vunpack.c.h.b16 %v360
    %v686 = vunpack.c.l.b16 %v361
    %v687 = vunpack.c.l.b16 %v362
    %v688 = vunpack.c.h.b16 %v362
    %v689 = vunpack.c.l.b16 %v363
    %v690 = vunpack.c.l.b16 %v364
    %v691 = vunpack.c.h.b16 %v364
    %v692 = vunpack.c.l.b16 %v365
    %v693 = vunpack.c.l.b16 %v366
    %v694 = vunpack.c.h.b16 %v366
    %v695 = vunpack.c.l.b16 %v367
    %v696 = vunpack.c.l.b16 %v368
    %v697 = vunpack.c.h.b16 %v368
    %v698 = vunpack.c.l.b16 %v369
    %v699 = vunpack.c.l.b16 %v370
    %v700 = vunpack.c.h.b16 %v370
    %v701 = vunpack.c.l.b16 %v371
    %v702 = vunpack.c.l.b16 %v372
    %v703 = vunpack.c.h.b16 %v372
    %v704 = vunpack.c.l.b16 %v373
    %v705 = vunpack.c.l.b16 %v374
    %v706 = vunpack.c.h.b16 %v374
    %v707 = vunpack.c.l.b16 %v375
    %v708 = vunpack.c.l.b16 %v376
    %v709 = vunpack.c.h.b16 %v376
    %v710 = vunpack.c.l.b16 %v377
    %v711 = vunpack.c.l.b16 %v378
    %v712 = vunpack.c.h.b16 %v378
    %v713 = vunpack.c.l.b16 %v379
    %v714 = vunpack.c.l.b16 %v380
    %v715 = vunpack.c.h.b16 %v380
    %v716 = vunpack.c.l.b16 %v381
    %v717 = vunpack.c.l.b16 %v382
    %v718 = vunpack.c.h.b16 %v382
    %v719 = vunpack.c.l.b16 %v383
    %v720 = vunpack.c.l.b16 %v384
    %v721 = vunpack.c.h.b16 %v384
    %v722 = vunpack.c.l.b16 %v385
    %v723 = vpack.c.b16 %v534, %v531
    %v724 = vpack.c.b16 %v535, %v532
    %v725 = vpack.c.b16 %v536, %v533
    %v726 = vpack.c.b16 %v540, %v537
    %v727 = vpack.c.b16 %v541, %v538
    %v728 = vpack.c.b16 %v542, %v539
    %v729 = vpack.c.b16 %v546, %v543
    %v730 = vpack.c.b16 %v547, %v544
    %v731 = vpack.c.b16 %v548, %v545
    %v732 = vpack.c.b16 %v552, %v549
    %v733 = vpack.c.b16 %v553, %v550
    %v734 = vpack.c.b16 %v554, %v551
    %v735 = vpack.c.b16 %v558, %v555
    %v736 = vpack.c.b16 %v559, %v556
    %v737 = vpack.c.b16 %v560, %v557
    %v738 = vpack.c.b16 %v564, %v561
    %v739 = vpack.c.b16 %v565, %v562
    %v740 = vpack.c.b16 %v566, %v563
    %v741 = vpack.c.b16 %v570, %v567
    %v742 = vpack.c.b16 %v571, %v568
    %v743 = vpack.c.b16 %v572, %v569
    %v744 = vpack.c.b16 %v576, %v573
    %v745 = vpack.c.b16 %v577, %v574
    %v746 = vpack.c.b16 %v578, %v575
    %v747 = vpack.c.b16 %v582, %v579
    %v748 = vpack.c.b16 %v583, %v580
    %v749 = vpack.c.b16 %v584, %v581
    %v750 = vpack.c.b16 %v588, %v585
    %v751 = vpack.c.b16 %v589, %v586
    %v752 = vpack.c.b16 %v590, %v587
    %v753 = vpack.c.b16 %v594, %v591
    %v754 = vpack.c.b16 %v595, %v592
    %v755 = vpack.c.b16 %v596, %v593
    %v756 = vpack.c.b16 %v600, %v597
    %v757 = vpack.c.b16 %v601, %v598
    %v758 = vpack.c.b16 %v602, %v599
    %v759 = vpack.c.b16 %v606, %v603
    %v760 = vpack.c.b16 %v607, %v604
    %v761 = vpack.c.b16 %v608, %v605
    %v762 = vpack.c.b16 %v612, %v609
    %v763 = vpack.c.b16 %v613, %v610
    %v764 = vpack.c.b16 %v614, %v611
    %v765 = vpack.c.b16 %v618, %v615
    %v766 = vpack.c.b16 %v619, %v616
    %v767 = vpack.c.b16 %v620, %v617
    %v768 = vpack.c.b16 %v624, %v621
    %v769 = vpack.c.b16 %v625, %v622
    %v770 = vpack.c.b16 %v626, %v623
    %v771 = vpack.c.b16 %v630, %v627
    %v772 = vpack.c.b16 %v631, %v628
    %v773 = vpack.c.b16 %v632, %v629
    %v774 = vpack.c.b16 %v636, %v633
    %v775 = vpack.c.b16 %v637, %v634
    %v776 = vpack.c.b16 %v638, %v635
    %v777 = vpack.c.b16 %v642, %v639
    %v778 = vpack.c.b16 %v643, %v640
    %v779 = vpack.c.b16 %v644, %v641
    %v780 = vpack.c.b16 %v648, %v645
    %v781 = vpack.c.b16 %v649, %v646
    %v782 = vpack.c.b16 %v650, %v647
    %v783 = vpack.c.b16 %v654, %v651
    %v784 = vpack.c.b16 %v655, %v652
    %v785 = vpack.c.b16 %v656, %v653
    %v786 = vpack.c.b16 %v660, %v657
    %v787 = vpack.c.b16 %v661, %v658
    %v788 = vpack.c.b16 %v662, %v659
    %v789 = vpack.c.b16 %v666, %v663
    %v790 = vpack.c.b16 %v667, %v664
    %v791 = vpack.c.b16 %v668, %v665
    %v792 = vpack.c.b16 %v672, %v669
    %v793 = vpack.c.b16 %v673, %v670
    %v794 = vpack.c.b16 %v674, %v671
    %v795 = vpack.c.b16 %v678, %v675
    %v796 = vpack.c.b16 %v679, %v676
    %v797 = vpack.c.b16 %v680, %v677
    %v798 = vpack.c.b16 %v684, %v681
    %v799 = vpack.c.b16 %v685, %v682
    %v800 = vpack.c.b16 %v686, %v683
    %v801 = vpack.c.b16 %v690, %v687
    %v802 = vpack.c.b16 %v691, %v688
    %v803 = vpack.c.b16 %v692, %v689
    %v804 = vpack.c.b16 %v696, %v693
    %v805 = vpack.c.b16 %v697, %v694
    %v806 = vpack.c.b16 %v698, %v695
    %v807 = vpack.c.b16 %v702, %v699
    %v808 = vpack.c.b16 %v703, %v700
    %v809 = vpack.c.b16 %v704, %v701
    %v810 = vpack.c.b16 %v708, %v705
    %v811 = vpack.c.b16 %v709, %v706
    %v812 = vpack.c.b16 %v710, %v707
    %v813 = vpack.c.b16 %v714, %v711
    %v814 = vpack.c.b16 %v715, %v712
    %v815 = vpack.c.b16 %v716, %v713
    %v816 = vpack.c.b16 %v720, %v717
    %v817 = vpack.c.b16 %v721, %v718
    %v818 = vpack.c.b16 %v722, %v719
    %915 = vmatprep.subr.bf16.mxu0 %v745
    %916 = vmatpush1.bf16.msra.mxu0 %v744
    %917 = vmatprep.subr.bf16.mxu0 %v742
    %918 = vmatpush1.bf16.msra.mxu0 %v741
    %919 = vmatprep.subr.bf16.mxu0 %v739
    %920 = vmatpush1.bf16.msra.mxu0 %v738
    %921 = vmatprep.subr.bf16.mxu0 %v736
    %922 = vmatpush1.bf16.msra.mxu0 %v735
    %923 = vmatprep.subr.bf16.mxu0 %v733
    %924 = vmatpush1.bf16.msra.mxu0 %v732
    %925 = vmatprep.subr.bf16.mxu0 %v730
    %926 = vmatpush1.bf16.msra.mxu0 %v729
    %927 = vmatprep.subr.bf16.mxu0 %v727
    %928 = vmatpush1.bf16.msra.mxu0 %v726
    %929 = vmatprep.subr.bf16.mxu0 %v724
    %930 = vmatpush1.bf16.msra.mxu0 %v723
    %931 = vmatprep.subr.bf16.mxu0 %v769
    %932 = vmatpush2.bf16.msra.mxu0 %v768
    %933 = vmatprep.subr.bf16.mxu0 %v766
    %934 = vmatpush2.bf16.msra.mxu0 %v765
    %935 = vmatprep.subr.bf16.mxu0 %v763
    %936 = vmatpush2.bf16.msra.mxu0 %v762
    %937 = vmatprep.subr.bf16.mxu0 %v760
    %938 = vmatpush2.bf16.msra.mxu0 %v759
    %939 = vmatprep.subr.bf16.mxu0 %v757
    %940 = vmatpush2.bf16.msra.mxu0 %v756
    %941 = vmatprep.subr.bf16.mxu0 %v754
    %942 = vmatpush2.bf16.msra.mxu0 %v753
    %943 = vmatprep.subr.bf16.mxu0 %v751
    %944 = vmatpush2.bf16.msra.mxu0 %v750
    %945 = vmatprep.subr.bf16.mxu0 %v748
    %946 = vmatpush2.bf16.msra.mxu0 %v747
    %947 = vmatprep.mubr.bf16.mxu0 %v255
    %948 = vmatmul.mubr.bf16.gmra.mxu0 %v254
    %v949 = vpop.f32.mrf.mxu0
    %v950 = vadd.f32 %v391, %v949
    %v951 = vpop.f32.mrf.mxu0
    %v952 = vadd.f32 %v395, %v951
    %v953 = vpop.f32.mrf.mxu0
    %v954 = vpop.f32.mrf.mxu0
    %955 = vdwg.mxu0
    %956 = vmatprep.subr.bf16.mxu0 %v793
    %957 = vmatpush1.bf16.msra.mxu0 %v792
    %958 = vmatprep.subr.bf16.mxu0 %v790
    %959 = vmatpush1.bf16.msra.mxu0 %v789
    %960 = vmatprep.subr.bf16.mxu0 %v787
    %961 = vmatpush1.bf16.msra.mxu0 %v786
    %962 = vmatprep.subr.bf16.mxu0 %v784
    %963 = vmatpush1.bf16.msra.mxu0 %v783
    %964 = vmatprep.subr.bf16.mxu0 %v781
    %965 = vmatpush1.bf16.msra.mxu0 %v780
    %966 = vmatprep.subr.bf16.mxu0 %v778
    %967 = vmatpush1.bf16.msra.mxu0 %v777
    %968 = vmatprep.subr.bf16.mxu0 %v775
    %969 = vmatpush1.bf16.msra.mxu0 %v774
    %970 = vmatprep.subr.bf16.mxu0 %v772
    %971 = vmatpush1.bf16.msra.mxu0 %v771
    %972 = vmatprep.subr.bf16.mxu0 %v817
    %973 = vmatpush2.bf16.msra.mxu0 %v816
    %974 = vmatprep.subr.bf16.mxu0 %v814
    %975 = vmatpush2.bf16.msra.mxu0 %v813
    %976 = vmatprep.subr.bf16.mxu0 %v811
    %977 = vmatpush2.bf16.msra.mxu0 %v810
    %978 = vmatprep.subr.bf16.mxu0 %v808
    %979 = vmatpush2.bf16.msra.mxu0 %v807
    %980 = vmatprep.subr.bf16.mxu0 %v805
    %981 = vmatpush2.bf16.msra.mxu0 %v804
    %982 = vmatprep.subr.bf16.mxu0 %v802
    %983 = vmatpush2.bf16.msra.mxu0 %v801
    %984 = vmatprep.subr.bf16.mxu0 %v799
    %985 = vmatpush2.bf16.msra.mxu0 %v798
    %986 = vmatprep.subr.bf16.mxu0 %v796
    %987 = vmatpush2.bf16.msra.mxu0 %v795
    %988 = vmatprep.mubr.bf16.mxu0 %v257
    %989 = vmatmul.mubr.bf16.gmra.mxu0 %v256
    %v990 = vpop.f32.mrf.mxu0
    %v991 = vadd.f32 %v950, %v990
    %v992 = vpop.f32.mrf.mxu0
    %v993 = vadd.f32 %v952, %v992
    %v994 = vpop.f32.mrf.mxu0
    %v995 = vpop.f32.mrf.mxu0
    %996 = vdwg.mxu0
    %997 = vmatprep.subr.bf16.mxu0 0
    %998 = vmatpush1.bf16.msra.mxu0 %v746
    %999 = vmatprep.subr.bf16.mxu0 0
    %1000 = vmatpush1.bf16.msra.mxu0 %v743
    %1001 = vmatprep.subr.bf16.mxu0 0
    %1002 = vmatpush1.bf16.msra.mxu0 %v740
    %1003 = vmatprep.subr.bf16.mxu0 0
    %1004 = vmatpush1.bf16.msra.mxu0 %v737
    %1005 = vmatprep.subr.bf16.mxu0 0
    %1006 = vmatpush1.bf16.msra.mxu0 %v734
    %1007 = vmatprep.subr.bf16.mxu0 0
    %1008 = vmatpush1.bf16.msra.mxu0 %v731
    %1009 = vmatprep.subr.bf16.mxu0 0
    %1010 = vmatpush1.bf16.msra.mxu0 %v728
    %1011 = vmatprep.subr.bf16.mxu0 0
    %1012 = vmatpush1.bf16.msra.mxu0 %v725
    %1013 = vmatprep.subr.bf16.mxu0 0
    %1014 = vmatpush2.bf16.msra.mxu0 %v770
    %1015 = vmatprep.subr.bf16.mxu0 0
    %1016 = vmatpush2.bf16.msra.mxu0 %v767
    %1017 = vmatprep.subr.bf16.mxu0 0
    %1018 = vmatpush2.bf16.msra.mxu0 %v764
    %1019 = vmatprep.subr.bf16.mxu0 0
    %1020 = vmatpush2.bf16.msra.mxu0 %v761
    %1021 = vmatprep.subr.bf16.mxu0 0
    %1022 = vmatpush2.bf16.msra.mxu0 %v758
    %1023 = vmatprep.subr.bf16.mxu0 0
    %1024 = vmatpush2.bf16.msra.mxu0 %v755
    %1025 = vmatprep.subr.bf16.mxu0 0
    %1026 = vmatpush2.bf16.msra.mxu0 %v752
    %1027 = vmatprep.subr.bf16.mxu0 0
    %1028 = vmatpush2.bf16.msra.mxu0 %v749
    %1029 = vmatprep.mubr.bf16.mxu0 %v255
    %1030 = vmatmul.mubr.bf16.gmra.mxu0 %v254
    %v1031 = vpop.f32.mrf.mxu0
    %v1032 = vadd.f32 %v399, %v1031
    %v1033 = vpop.f32.mrf.mxu0
    %v1034 = vpop.f32.mrf.mxu0
    %v1035 = vpop.f32.mrf.mxu0
    %1036 = vdwg.mxu0
    %1037 = vmatprep.subr.bf16.mxu0 0
    %1038 = vmatpush1.bf16.msra.mxu0 %v794
    %1039 = vmatprep.subr.bf16.mxu0 0
    %1040 = vmatpush1.bf16.msra.mxu0 %v791
    %1041 = vmatprep.subr.bf16.mxu0 0
    %1042 = vmatpush1.bf16.msra.mxu0 %v788
    %1043 = vmatprep.subr.bf16.mxu0 0
    %1044 = vmatpush1.bf16.msra.mxu0 %v785
    %1045 = vmatprep.subr.bf16.mxu0 0
    %1046 = vmatpush1.bf16.msra.mxu0 %v782
    %1047 = vmatprep.subr.bf16.mxu0 0
    %1048 = vmatpush1.bf16.msra.mxu0 %v779
    %1049 = vmatprep.subr.bf16.mxu0 0
    %1050 = vmatpush1.bf16.msra.mxu0 %v776
    %1051 = vmatprep.subr.bf16.mxu0 0
    %1052 = vmatpush1.bf16.msra.mxu0 %v773
    %1053 = vmatprep.subr.bf16.mxu0 0
    %1054 = vmatpush2.bf16.msra.mxu0 %v818
    %1055 = vmatprep.subr.bf16.mxu0 0
    %1056 = vmatpush2.bf16.msra.mxu0 %v815
    %1057 = vmatprep.subr.bf16.mxu0 0
    %1058 = vmatpush2.bf16.msra.mxu0 %v812
    %1059 = vmatprep.subr.bf16.mxu0 0
    %1060 = vmatpush2.bf16.msra.mxu0 %v809
    %1061 = vmatprep.subr.bf16.mxu0 0
    %1062 = vmatpush2.bf16.msra.mxu0 %v806
    %1063 = vmatprep.subr.bf16.mxu0 0
    %1064 = vmatpush2.bf16.msra.mxu0 %v803
    %1065 = vmatprep.subr.bf16.mxu0 0
    %1066 = vmatpush2.bf16.msra.mxu0 %v800
    %1067 = vmatprep.subr.bf16.mxu0 0
    %1068 = vmatpush2.bf16.msra.mxu0 %v797
    %1069 = vmatprep.mubr.bf16.mxu0 %v257
    %1070 = vmatmul.mubr.bf16.gmra.mxu0 %v256
    %v1071 = vpop.f32.mrf.mxu0
    %v1072 = vadd.f32 %v1032, %v1071
    %v1073 = vpop.f32.mrf.mxu0
    %v1074 = vpop.f32.mrf.mxu0
    %v1075 = vpop.f32.mrf.mxu0
    %1076 = vdwg.mxu0
    %v1077 = vmax.f32 %v991, 0.0
    %v1078 = vmax.f32 %v993, 0.0
    %v1079 = vmax.f32 %v1072, 0.0
    %v1080 = vpack.c.bf16 %v1077, %v1077
    %v1081 = vpack.c.bf16 %v1078, %v1078
    %v1082 = vpack.c.bf16 %v1079, %v1079
    %v1083 = vld [vmem:[#allocation10] sm:$0xf]
    %v1084 = vld [vmem:[#allocation10 + $0x4] sm:$0xf]
    %v1085 = vld [vmem:[#allocation10 + $0x8] sm:$0xf]
    %v1086 = vld [vmem:[#allocation10 + $0xc] sm:$0xf]
    %v1087 = vld [vmem:[#allocation10 + $0x10] sm:$0xf]
    %v1088 = vld [vmem:[#allocation10 + $0x14] sm:$0xf]
    %v1089 = vld [vmem:[#allocation10 + $0x18] sm:$0xf]
    %v1090 = vld [vmem:[#allocation10 + $0x1c] sm:$0xf]
    %v1091 = vld [vmem:[#allocation10 + $0x20] sm:$0xf]
    %v1092 = vld [vmem:[#allocation10 + $0x24] sm:$0xf]
    %v1093 = vld [vmem:[#allocation10 + $0x28] sm:$0xf]
    %v1094 = vld [vmem:[#allocation10 + $0x2c] sm:$0xf]
    %v1095 = vld [vmem:[#allocation10 + $0x30] sm:$0xf]
    %v1096 = vld [vmem:[#allocation10 + $0x34] sm:$0xf]
    %v1097 = vld [vmem:[#allocation10 + $0x38] sm:$0xf]
    %v1098 = vld [vmem:[#allocation10 + $0x3c] sm:$0xf]
    %v1099 = vld [vmem:[#allocation10 + $0x40] sm:$0xf]
    %v1100 = vld [vmem:[#allocation10 + $0x44] sm:$0xf]
    %v1101 = vld [vmem:[#allocation10 + $0x48] sm:$0xf]
    %v1102 = vld [vmem:[#allocation10 + $0x4c] sm:$0xf]
    %v1103 = vld [vmem:[#allocation10 + $0x50] sm:$0xf]
    %v1104 = vld [vmem:[#allocation10 + $0x54] sm:$0xf]
    %v1105 = vld [vmem:[#allocation10 + $0x58] sm:$0xf]
    %v1106 = vld [vmem:[#allocation10 + $0x5c] sm:$0xf]
    %v1107 = vld [vmem:[#allocation10 + $0x60] sm:$0xf]
    %v1108 = vld [vmem:[#allocation10 + $0x64] sm:$0xf]
    %v1109 = vld [vmem:[#allocation10 + $0x68] sm:$0xf]
    %v1110 = vld [vmem:[#allocation10 + $0x6c] sm:$0xf]
    %v1111 = vld [vmem:[#allocation10 + $0x70] sm:$0xf]
    %v1112 = vld [vmem:[#allocation10 + $0x74] sm:$0xf]
    %v1113 = vld [vmem:[#allocation10 + $0x78] sm:$0xf]
    %v1114 = vld [vmem:[#allocation10 + $0x7c] sm:$0xf]
    %v1115 = vld [vmem:[#allocation10 + $0x80] sm:$0xf]
    %v1116 = vld [vmem:[#allocation10 + $0x84] sm:$0xf]
    %v1117 = vld [vmem:[#allocation10 + $0x88] sm:$0xf]
    %v1118 = vld [vmem:[#allocation10 + $0x8c] sm:$0xf]
    %v1119 = vld [vmem:[#allocation10 + $0x90] sm:$0xf]
    %v1120 = vld [vmem:[#allocation10 + $0x94] sm:$0xf]
    %v1121 = vld [vmem:[#allocation10 + $0x98] sm:$0xf]
    %v1122 = vld [vmem:[#allocation10 + $0x9c] sm:$0xf]
    %v1123 = vld [vmem:[#allocation10 + $0xa0] sm:$0xf]
    %v1124 = vld [vmem:[#allocation10 + $0xa4] sm:$0xf]
    %v1125 = vld [vmem:[#allocation10 + $0xa8] sm:$0xf]
    %v1126 = vld [vmem:[#allocation10 + $0xac] sm:$0xf]
    %v1127 = vld [vmem:[#allocation10 + $0xb0] sm:$0xf]
    %v1128 = vld [vmem:[#allocation10 + $0xb4] sm:$0xf]
    %v1129 = vld [vmem:[#allocation10 + $0xb8] sm:$0xf]
    %v1130 = vld [vmem:[#allocation10 + $0xbc] sm:$0xf]
    %v1131 = vld [vmem:[%s6] sm:$0x1]
    %v1133 = vlaneseq
    %v1134 = vshrl.u32 %v1133, 7
    %v1135 = vsub.s32 0, %v1134
    %v1136 = vrot.slane %v1131, %v1135
    %v1186 = vunpack.c.l.b16 %v1083
    %v1187 = vunpack.c.l.b16 %v1084
    %v1188 = vunpack.c.l.b16 %v1085
    %v1189 = vunpack.c.l.b16 %v1086
    %v1190 = vunpack.c.l.b16 %v1087
    %v1191 = vunpack.c.l.b16 %v1088
    %v1192 = vunpack.c.l.b16 %v1089
    %v1193 = vunpack.c.l.b16 %v1090
    %v1194 = vunpack.c.l.b16 %v1091
    %v1195 = vunpack.c.l.b16 %v1092
    %v1196 = vunpack.c.l.b16 %v1093
    %v1197 = vunpack.c.l.b16 %v1094
    %v1198 = vunpack.c.l.b16 %v1095
    %v1199 = vunpack.c.l.b16 %v1096
    %v1200 = vunpack.c.l.b16 %v1097
    %v1201 = vunpack.c.l.b16 %v1098
    %v1202 = vunpack.c.l.b16 %v1099
    %v1203 = vunpack.c.l.b16 %v1100
    %v1204 = vunpack.c.l.b16 %v1101
    %v1205 = vunpack.c.l.b16 %v1102
    %v1206 = vunpack.c.l.b16 %v1103
    %v1207 = vunpack.c.l.b16 %v1104
    %v1208 = vunpack.c.l.b16 %v1105
    %v1209 = vunpack.c.l.b16 %v1106
    %v1210 = vunpack.c.l.b16 %v1107
    %v1211 = vunpack.c.l.b16 %v1108
    %v1212 = vunpack.c.l.b16 %v1109
    %v1213 = vunpack.c.l.b16 %v1110
    %v1214 = vunpack.c.l.b16 %v1111
    %v1215 = vunpack.c.l.b16 %v1112
    %v1216 = vunpack.c.l.b16 %v1113
    %v1217 = vunpack.c.l.b16 %v1114
    %v1218 = vunpack.c.l.b16 %v1115
    %v1219 = vunpack.c.l.b16 %v1116
    %v1220 = vunpack.c.l.b16 %v1117
    %v1221 = vunpack.c.l.b16 %v1118
    %v1222 = vunpack.c.l.b16 %v1119
    %v1223 = vunpack.c.l.b16 %v1120
    %v1224 = vunpack.c.l.b16 %v1121
    %v1225 = vunpack.c.l.b16 %v1122
    %v1226 = vunpack.c.l.b16 %v1123
    %v1227 = vunpack.c.l.b16 %v1124
    %v1228 = vunpack.c.l.b16 %v1125
    %v1229 = vunpack.c.l.b16 %v1126
    %v1230 = vunpack.c.l.b16 %v1127
    %v1231 = vunpack.c.l.b16 %v1128
    %v1232 = vunpack.c.l.b16 %v1129
    %v1233 = vunpack.c.l.b16 %v1130
    %v1234 = vpack.c.b16 %v1187, %v1186
    %v1235 = vpack.c.b16 %v1189, %v1188
    %v1236 = vpack.c.b16 %v1191, %v1190
    %v1237 = vpack.c.b16 %v1193, %v1192
    %v1238 = vpack.c.b16 %v1195, %v1194
    %v1239 = vpack.c.b16 %v1197, %v1196
    %v1240 = vpack.c.b16 %v1199, %v1198
    %v1241 = vpack.c.b16 %v1201, %v1200
    %v1242 = vpack.c.b16 %v1203, %v1202
    %v1243 = vpack.c.b16 %v1205, %v1204
    %v1244 = vpack.c.b16 %v1207, %v1206
    %v1245 = vpack.c.b16 %v1209, %v1208
    %v1246 = vpack.c.b16 %v1211, %v1210
    %v1247 = vpack.c.b16 %v1213, %v1212
    %v1248 = vpack.c.b16 %v1215, %v1214
    %v1249 = vpack.c.b16 %v1217, %v1216
    %v1250 = vpack.c.b16 %v1219, %v1218
    %v1251 = vpack.c.b16 %v1221, %v1220
    %v1252 = vpack.c.b16 %v1223, %v1222
    %v1253 = vpack.c.b16 %v1225, %v1224
    %v1254 = vpack.c.b16 %v1227, %v1226
    %v1255 = vpack.c.b16 %v1229, %v1228
    %v1256 = vpack.c.b16 %v1231, %v1230
    %v1257 = vpack.c.b16 %v1233, %v1232
    %1282 = vmatprep.subr.bf16.mxu0 0
    %1283 = vmatpush1.bf16.msra.mxu0 %v1241
    %1284 = vmatprep.subr.bf16.mxu0 0
    %1285 = vmatpush1.bf16.msra.mxu0 %v1240
    %1286 = vmatprep.subr.bf16.mxu0 0
    %1287 = vmatpush1.bf16.msra.mxu0 %v1239
    %1288 = vmatprep.subr.bf16.mxu0 0
    %1289 = vmatpush1.bf16.msra.mxu0 %v1238
    %1290 = vmatprep.subr.bf16.mxu0 0
    %1291 = vmatpush1.bf16.msra.mxu0 %v1237
    %1292 = vmatprep.subr.bf16.mxu0 0
    %1293 = vmatpush1.bf16.msra.mxu0 %v1236
    %1294 = vmatprep.subr.bf16.mxu0 0
    %1295 = vmatpush1.bf16.msra.mxu0 %v1235
    %1296 = vmatprep.subr.bf16.mxu0 0
    %1297 = vmatpush1.bf16.msra.mxu0 %v1234
    %1298 = vmatprep.subr.bf16.mxu0 0
    %1299 = vmatpush2.bf16.msra.mxu0 %v1249
    %1300 = vmatprep.subr.bf16.mxu0 0
    %1301 = vmatpush2.bf16.msra.mxu0 %v1248
    %1302 = vmatprep.subr.bf16.mxu0 0
    %1303 = vmatpush2.bf16.msra.mxu0 %v1247
    %1304 = vmatprep.subr.bf16.mxu0 0
    %1305 = vmatpush2.bf16.msra.mxu0 %v1246
    %1306 = vmatprep.subr.bf16.mxu0 0
    %1307 = vmatpush2.bf16.msra.mxu0 %v1245
    %1308 = vmatprep.subr.bf16.mxu0 0
    %1309 = vmatpush2.bf16.msra.mxu0 %v1244
    %1310 = vmatprep.subr.bf16.mxu0 0
    %1311 = vmatpush2.bf16.msra.mxu0 %v1243
    %1312 = vmatprep.subr.bf16.mxu0 0
    %1313 = vmatpush2.bf16.msra.mxu0 %v1242
    %1314 = vmatprep.mubr.bf16.mxu0 %v1081
    %1315 = vmatmul.mubr.bf16.gmra.mxu0 %v1080
    %v1316 = vpop.f32.mrf.mxu0
    %v1317 = vadd.f32 %v1136, %v1316
    %v1318 = vpop.f32.mrf.mxu0
    %v1319 = vpop.f32.mrf.mxu0
    %v1320 = vpop.f32.mrf.mxu0
    %1321 = vdwg.mxu0
    %1322 = vmatprep.subr.bf16.mxu0 0
    %1323 = vmatpush1.bf16.msra.mxu0 %v1257
    %1324 = vmatprep.subr.bf16.mxu0 0
    %1325 = vmatpush1.bf16.msra.mxu0 %v1256
    %1326 = vmatprep.subr.bf16.mxu0 0
    %1327 = vmatpush1.bf16.msra.mxu0 %v1255
    %1328 = vmatprep.subr.bf16.mxu0 0
    %1329 = vmatpush1.bf16.msra.mxu0 %v1254
    %1330 = vmatprep.subr.bf16.mxu0 0
    %1331 = vmatpush1.bf16.msra.mxu0 %v1253
    %1332 = vmatprep.subr.bf16.mxu0 0
    %1333 = vmatpush1.bf16.msra.mxu0 %v1252
    %1334 = vmatprep.subr.bf16.mxu0 0
    %1335 = vmatpush1.bf16.msra.mxu0 %v1251
    %1336 = vmatprep.subr.bf16.mxu0 0
    %1337 = vmatpush1.bf16.msra.mxu0 %v1250
    %1338 = vmatprep.subr.bf16.mxu0 0
    %1339 = vmatpush2.bf16.msra.mxu0 0
    %1340 = vmatprep.subr.bf16.mxu0 0
    %1341 = vmatpush2.bf16.msra.mxu0 0
    %1342 = vmatprep.subr.bf16.mxu0 0
    %1343 = vmatpush2.bf16.msra.mxu0 0
    %1344 = vmatprep.subr.bf16.mxu0 0
    %1345 = vmatpush2.bf16.msra.mxu0 0
    %1346 = vmatprep.subr.bf16.mxu0 0
    %1347 = vmatpush2.bf16.msra.mxu0 0
    %1348 = vmatprep.subr.bf16.mxu0 0
    %1349 = vmatpush2.bf16.msra.mxu0 0
    %1350 = vmatprep.subr.bf16.mxu0 0
    %1351 = vmatpush2.bf16.msra.mxu0 0
    %1352 = vmatprep.subr.bf16.mxu0 0
    %1353 = vmatpush2.bf16.msra.mxu0 0
    %1354 = vmatprep.mubr.bf16.mxu0 0
    %1355 = vmatmul.mubr.bf16.gmra.mxu0 %v1082
    %v1356 = vpop.f32.mrf.mxu0
    %v1357 = vadd.f32 %v1317, %v1356
    %v1358 = vpop.f32.mrf.mxu0
    %v1359 = vpop.f32.mrf.mxu0
    %v1360 = vpop.f32.mrf.mxu0
    %1361 = vdwg.mxu0
    %v1362 = vtanh.pop %v1357
    %1363 = vst [vmem:[#allocation11] sm:$0xff] %v1362
    // Predicated region
    $region50: #{actor_forward.1} parent=1 // pred_check
      _
    $region51: #{actor_forward.1} parent=1 // pred_check_branch
      %1365 = sbr.rel (0) target = $region53
    $region52: #{actor_forward.1} parent=1 // pred_region
      %s1367 = ssub.s32 128, 128
      %1368 = vsyncadd [#allocation4], %s1367
      %s1370 = sshll.u32 [#allocation11], 4
      %s1371 = int_to_ptr.vmem [resolvable:$true] %s1370
      %1373 = dma.vmem_to_hbm [thread:$0]  %s1371, 128, %s7, [#allocation4]
    $region53: #{actor_forward.1} parent=1 // pred_fallthru
      _
    // Predicated region
    $region54: #{actor_forward.1} parent=1 // pred_check
      _
    $region55: #{actor_forward.1} parent=1 // pred_check_branch
      %1375 = sbr.rel (0) target = $region57
    $region56: #{actor_forward.1} parent=1 // pred_region
      %1376 = dma.done [#allocation4], 128
    $region57: #{actor_forward.1} parent=1 // pred_fallthru
      _
    %1377 = vsyncpa [#allocation3], 1
    %1378 = vsyncpa [#allocation6], 1
    %1379 = vsyncpa [#allocation9], 1
    %1380 = vsyncpa [#allocation4], 1

</llo_original>
